<compile_context>
chip_gen: v7x
topology: tpu7x:2x2x1
jax: 0.10.0
libtpu: 0.0.40
codegen_flags: <defaults>
</compile_context>

<pallas_src>
import jax
import jax.numpy as jnp
from jax import lax
from jax.experimental import pallas as pl
from jax.experimental.pallas import tpu as pltpu

_LANE = 128


def _linear_kernel(s_ref, w_ref, b_ref, o_ref):
    # s_ref: (TR, C_s)   w_ref: (C_out_pad, C_s)   b_ref: (1, C_out_pad)
    # o_ref: (TR, C_out_pad)
    # Contract the last axis of both operands (s @ W^T) on the MXU,
    # accumulating in f32; no transpose of W is ever materialized.
    acc = lax.dot_general(
        s_ref[...],
        w_ref[...],
        dimension_numbers=(((1,), (1,)), ((), ())),
        preferred_element_type=jnp.float32,
    )
    o_ref[...] = (acc + b_ref[...].astype(jnp.float32)).astype(o_ref.dtype)


def _round_up(x, m):
    return ((x + m - 1) // m) * m


def experimentally_resolved_head(s, weight, bias, *, row_tile=1024):
    """
    Args:
        s:      [*, N_res, C_s]
        weight: [C_out, C_s]   (PyTorch nn.Linear convention)
        bias:   [C_out]
    Returns:
        logits: [*, N_res, C_out]
    """
    *batch_dims, n_res, c_s = s.shape
    c_out = int(weight.shape[0])

    rows = int(n_res)
    for d in batch_dims:
        rows *= int(d)

    # Sublane granularity depends on element width (f32: 8, bf16: 16, int8: 32).
    itemsize = jnp.dtype(s.dtype).itemsize
    sublane = max(8, 32 // itemsize)

    # Lane-dense output: pad c_out up to a multiple of 128.
    c_out_pad = _round_up(c_out, _LANE)

    # Row tiling: pick a tile, then pad rows to a multiple of it.
    tr = min(int(row_tile), _round_up(rows, sublane))
    tr = _round_up(tr, sublane)
    rows_pad = _round_up(rows, tr)
    grid_r = rows_pad // tr

    s_2d = s.reshape(rows, c_s)
    if rows_pad != rows:
        s_2d = jnp.pad(s_2d, ((0, rows_pad - rows), (0, 0)))

    # Keep weight in native (C_out, C_s) layout; only zero-pad the out dim.
    if c_out_pad != c_out:
        w_pad = jnp.pad(weight, ((0, c_out_pad - c_out), (0, 0)))
        b_pad = jnp.pad(bias, ((0, c_out_pad - c_out),))
    else:
        w_pad, b_pad = weight, bias
    b_2d = b_pad.reshape(1, c_out_pad)

    out_bytes = jnp.dtype(s.dtype).itemsize
    cost = pl.CostEstimate(
        flops=2 * rows_pad * c_s * c_out_pad,
        transcendentals=0,
        bytes_accessed=(
            rows_pad * c_s * itemsize
            + c_out_pad * c_s * jnp.dtype(w_pad.dtype).itemsize
            + c_out_pad * jnp.dtype(b_pad.dtype).itemsize
            + rows_pad * c_out_pad * out_bytes
        ),
    )

    out_2d = pl.pallas_call(
        _linear_kernel,
        out_shape=jax.ShapeDtypeStruct((rows_pad, c_out_pad), s.dtype),
        grid_spec=pltpu.PrefetchScalarGridSpec(
            num_scalar_prefetch=0,
            grid=(grid_r,),
            in_specs=[
                # s: tiled along rows -> auto double-buffered DMA pipeline.
                pl.BlockSpec((tr, c_s), lambda i: (i, 0)),
                # weight / bias: constant block index -> VMEM-resident.
                pl.BlockSpec((c_out_pad, c_s), lambda i: (0, 0)),
                pl.BlockSpec((1, c_out_pad), lambda i: (0, 0)),
            ],
            out_specs=pl.BlockSpec((tr, c_out_pad), lambda i: (i, 0)),
        ),
        compiler_params=pltpu.CompilerParams(
            dimension_semantics=("parallel",),
        ),
        cost_estimate=cost,
    )(s_2d, w_pad, b_2d)

    out = out_2d[:rows, :c_out]
    return out.reshape(*batch_dims, n_res, c_out)


def init_params(key, c_s, c_out, dtype=jnp.float32):
    # NOTE: the real module uses init='final' (zeros). We use small
    # deterministic random values so the kernel output is non-trivial.
    kw, kb = jax.random.split(key)
    weight = jax.random.normal(kw, (c_out, c_s), dtype=dtype) * 0.02
    bias = jax.random.normal(kb, (c_out,), dtype=dtype) * 0.01
    return weight, bias


if __name__ == "__main__":
    key = jax.random.PRNGKey(0)
    k_s, k_p = jax.random.split(key)

    batch = 2
    n_res = 8
    c_s = 32
    c_out = 37

    s = jax.random.normal(k_s, (batch, n_res, c_s), dtype=jnp.float32)
    weight, bias = init_params(k_p, c_s, c_out)

    logits = experimentally_resolved_head(s, weight, bias)
    logits = jax.block_until_ready(logits)

    # reference check in plain JAX
    ref = jnp.einsum("bnc,oc->bno", s, weight) + bias
    assert logits.shape == (batch, n_res, c_out), logits.shape
    assert jnp.allclose(logits, ref, atol=1e-5, rtol=1e-5), "mismatch vs reference"

    print("KERNEL_OK")
</pallas_src>

<mosaic_0001>
module attributes {stable_mosaic.version = 11 : i64} {
  func.func @_linear_kernel(%arg0: i32, %arg1: memref<16x32xf32, #tpu.memory_space<vmem>>, %arg2: memref<128x32xf32, #tpu.memory_space<vmem>>, %arg3: memref<1x128xf32, #tpu.memory_space<vmem>>, %arg4: memref<16x128xf32, #tpu.memory_space<vmem>>) attributes {dimension_semantics = [#tpu.dimension_semantics<parallel>], iteration_bounds = array<i64: 1>, scalar_prefetch = 0 : i64, scratch_operands = 0 : i64, tpu.core_type = #tpu.core_type<tc>, window_params = [{transform_indices = @transform_0, window_bounds = array<i64: 16, 32>}, {pipeline_mode = #tpu.pipeline_mode<synchronous>, transform_indices = @transform_1, window_bounds = array<i64: 128, 32>}, {pipeline_mode = #tpu.pipeline_mode<synchronous>, transform_indices = @transform_2, window_bounds = array<i64: 1, 128>}, {transform_indices = @transform_3, window_bounds = array<i64: 16, 128>}]} {
    %c0 = arith.constant 0 : index
    %c0_0 = arith.constant 0 : index
    %0 = vector.load %arg1[%c0, %c0_0] : memref<16x32xf32, #tpu.memory_space<vmem>>, vector<16x32xf32>
    %c0_1 = arith.constant 0 : index
    %c0_2 = arith.constant 0 : index
    %1 = vector.load %arg2[%c0_1, %c0_2] : memref<128x32xf32, #tpu.memory_space<vmem>>, vector<128x32xf32>
    %cst = arith.constant dense<0.000000e+00> : vector<16x128xf32>
    %2 = tpu.matmul %0, %1, %cst {dimension_numbers = #tpu.dot_dimension_numbers<[1], [1], [0], [0], [0, 0, 1, 0], [], []>} : vector<16x32xf32>, vector<128x32xf32>, vector<16x128xf32> -> vector<16x128xf32>
    %c0_3 = arith.constant 0 : index
    %c0_4 = arith.constant 0 : index
    %3 = vector.load %arg3[%c0_3, %c0_4] : memref<1x128xf32, #tpu.memory_space<vmem>>, vector<1x128xf32>
    %4 = vector.broadcast %3 : vector<1x128xf32> to vector<16x128xf32>
    %5 = arith.addf %2, %4 : vector<16x128xf32>
    %c0_5 = arith.constant 0 : index
    %c0_6 = arith.constant 0 : index
    %6 = vector.load %arg4[%c0_5, %c0_6] : memref<16x128xf32, #tpu.memory_space<vmem>>, vector<16x128xf32>
    tpu.vector_store %arg4[%c0_5, %c0_6], %5 {strides = array<i32>} : memref<16x128xf32, #tpu.memory_space<vmem>>, vector<16x128xf32>,
    return
  }
  func.func @transform_0(%arg0: i32) -> (i32, i32) {
    %c0_i32 = arith.constant 0 : i32
    %c0_i32_0 = arith.constant 0 : i32
    return %arg0, %c0_i32 : i32, i32
  }
  func.func @transform_1(%arg0: i32) -> (i32, i32) {
    %c0_i32 = arith.constant 0 : i32
    %c0_i32_0 = arith.constant 0 : i32
    %c0_i32_1 = arith.constant 0 : i32
    return %c0_i32, %c0_i32_0 : i32, i32
  }
  func.func @transform_2(%arg0: i32) -> (i32, i32) {
    %c0_i32 = arith.constant 0 : i32
    %c0_i32_0 = arith.constant 0 : i32
    %c0_i32_1 = arith.constant 0 : i32
    return %c0_i32, %c0_i32_0 : i32, i32
  }
  func.func @transform_3(%arg0: i32) -> (i32, i32) {
    %c0_i32 = arith.constant 0 : i32
    %c0_i32_0 = arith.constant 0 : i32
    return %arg0, %c0_i32 : i32, i32
  }
}

</mosaic_0001>

<llo_original>
// kernel: tpu_custom_call.1
$region0: #{tpu_custom_call.1}
  #allocation0 [shape = 'u32[]', space=smem, size = 0x4, offset = 0x4, fixed_abs, tag = 'smem constant byte address 0x4 - core index']
  #allocation1 [shape = 'u32[144,128]{1,0:T(1,128)}', space=vmem, size = 0x12000, scoped, tag = 'internal scratch']
  %s0 = inlined_call_operand.vmem [shape: f32[16,32], index: 0, kind: input, shape index: {}]
  %s1 = inlined_call_operand.vmem [shape: f32[128,32], index: 1, kind: input, shape index: {}]
  %s2 = inlined_call_operand.vmem [shape: f32[1,128], index: 2, kind: input, shape index: {}]
  %s3 = inlined_call_operand.hbm [shape: f32[16,128], index: 3, kind: output, shape index: {}]
  %s4 = sld [smem:[#allocation0]]
  $region22: #{tpu_custom_call.1} parent=0
    _
  %s6 = ssub.s32 1, %s4
  %s7 = scalar_select 0, %s6, %s4
  $region1: #{tpu_custom_call.1} parent=0
    #allocation2 [shape = 'u8[8192]{0}', space=vmem, size = 0x2000, scoped, tag = 'output window, operand 0, single buffered']
    #allocation3 [shape = 's32[1]{0}', space=sflag, size = 0x4, scoped, tag = 'scoped memory for tpu_custom_call.1']
    %8 = vsyncpa [#allocation3], 0
    // Predicated region
    $region2: #{tpu_custom_call.1} parent=1 // pred_check
      _
    $region3: #{tpu_custom_call.1} parent=1 // pred_check_branch
      %10 = sbr.rel (0) target = $region5
    $region4: #{tpu_custom_call.1} parent=1 // pred_region
      _
    $region5: #{tpu_custom_call.1} parent=1 // pred_fallthru
      _
    // Predicated region
    $region6: #{tpu_custom_call.1} parent=1 // pred_check
      _
    $region7: #{tpu_custom_call.1} parent=1 // pred_check_branch
      %12 = sbr.rel (0) target = $region9
    $region8: #{tpu_custom_call.1} parent=1 // pred_region
      _
    $region9: #{tpu_custom_call.1} parent=1 // pred_fallthru
      _
    // Predicated region
    $region10: #{tpu_custom_call.1} parent=1 // pred_check
      _
    $region11: #{tpu_custom_call.1} parent=1 // pred_check_branch
      %14 = sbr.rel (0) target = $region13
    $region12: #{tpu_custom_call.1} parent=1 // pred_region
      _
    $region13: #{tpu_custom_call.1} parent=1 // pred_fallthru
      _
    %v15 = vld [vmem:[%s0] sm:$0xff]
    %v16 = vld [vmem:[%s0 + $0x8] sm:$0xff]
    %v17 = vld [vmem:[%s1] sm:$0xff]
    %v18 = vld [vmem:[%s1 + $0x8] sm:$0xff]
    %v19 = vld [vmem:[%s1 + $0x10] sm:$0xff]
    %v20 = vld [vmem:[%s1 + $0x18] sm:$0xff]
    %v21 = vld [vmem:[%s1 + $0x20] sm:$0xff]
    %v22 = vld [vmem:[%s1 + $0x28] sm:$0xff]
    %v23 = vld [vmem:[%s1 + $0x30] sm:$0xff]
    %v24 = vld [vmem:[%s1 + $0x38] sm:$0xff]
    %v25 = vld [vmem:[%s1 + $0x40] sm:$0xff]
    %v26 = vld [vmem:[%s1 + $0x48] sm:$0xff]
    %v27 = vld [vmem:[%s1 + $0x50] sm:$0xff]
    %v28 = vld [vmem:[%s1 + $0x58] sm:$0xff]
    %v29 = vld [vmem:[%s1 + $0x60] sm:$0xff]
    %v30 = vld [vmem:[%s1 + $0x68] sm:$0xff]
    %v31 = vld [vmem:[%s1 + $0x70] sm:$0xff]
    %v32 = vld [vmem:[%s1 + $0x78] sm:$0xff]
    %v33 = vld [vmem:[%s2] sm:$0x1]
    %v35 = vlaneseq
    %v36 = vshrl.u32 %v35, 7
    %v37 = vsub.s32 0, %v36
    %v38 = vrot.slane %v33, %v37
    %vm40 = vcmask 261120
    %v42 = vsel %vm40, %v15, 0
    %v45 = vsel %vm40, %v16, 0
    %v48 = vsel %vm40, %v17, 0
    %v51 = vsel %vm40, %v18, 0
    %v54 = vsel %vm40, %v19, 0
    %v57 = vsel %vm40, %v20, 0
    %v60 = vsel %vm40, %v21, 0
    %v63 = vsel %vm40, %v22, 0
    %v66 = vsel %vm40, %v23, 0
    %v69 = vsel %vm40, %v24, 0
    %v72 = vsel %vm40, %v25, 0
    %v75 = vsel %vm40, %v26, 0
    %v78 = vsel %vm40, %v27, 0
    %v81 = vsel %vm40, %v28, 0
    %v84 = vsel %vm40, %v29, 0
    %v87 = vsel %vm40, %v30, 0
    %v90 = vsel %vm40, %v31, 0
    %v93 = vsel %vm40, %v32, 0
    %95 = vmatprep.subr.mxu0 0.0
    %96 = vmatpush1.xpose.msra.mxu0 %v48
    %97 = vmatprep.subr.mxu0 0.0
    %98 = vmatpush1.xpose.msra.mxu0 %v51
    %99 = vmatprep.subr.mxu0 0.0
    %100 = vmatpush1.xpose.msra.mxu0 %v54
    %101 = vmatprep.subr.mxu0 0.0
    %102 = vmatpush1.xpose.msra.mxu0 %v57
    %103 = vmatprep.subr.mxu0 0.0
    %104 = vmatpush1.xpose.msra.mxu0 %v60
    %105 = vmatprep.subr.mxu0 0.0
    %106 = vmatpush1.xpose.msra.mxu0 %v63
    %107 = vmatprep.subr.mxu0 0.0
    %108 = vmatpush1.xpose.msra.mxu0 %v66
    %109 = vmatprep.subr.mxu0 0.0
    %110 = vmatpush1.xpose.msra.mxu0 %v69
    %111 = vmatprep.subr.mxu0 0.0
    %112 = vmatpush1.xpose.msra.mxu0 %v72
    %113 = vmatprep.subr.mxu0 0.0
    %114 = vmatpush1.xpose.msra.mxu0 %v75
    %115 = vmatprep.subr.mxu0 0.0
    %116 = vmatpush1.xpose.msra.mxu0 %v78
    %117 = vmatprep.subr.mxu0 0.0
    %118 = vmatpush1.xpose.msra.mxu0 %v81
    %119 = vmatprep.subr.mxu0 0.0
    %120 = vmatpush1.xpose.msra.mxu0 %v84
    %121 = vmatprep.subr.mxu0 0.0
    %122 = vmatpush1.xpose.msra.mxu0 %v87
    %123 = vmatprep.subr.mxu0 0.0
    %124 = vmatpush1.xpose.msra.mxu0 %v90
    %125 = vmatprep.subr.mxu0 0.0
    %126 = vmatpush1.xpose.msra.mxu0 %v93
    %127 = vmatprep.subr.mxu0 0.0
    %128 = vmatpush1.xpose.msra.mxu0 0.0
    %129 = vmatprep.subr.mxu0 0.0
    %130 = vmatpush1.xpose.msra.mxu0 0.0
    %131 = vmatprep.subr.mxu0 0.0
    %132 = vmatpush1.xpose.msra.mxu0 0.0
    %133 = vmatprep.subr.mxu0 0.0
    %134 = vmatpush1.xpose.msra.mxu0 0.0
    %135 = vmatprep.subr.mxu0 0.0
    %136 = vmatpush1.xpose.msra.mxu0 0.0
    %137 = vmatprep.subr.mxu0 0.0
    %138 = vmatpush1.xpose.msra.mxu0 0.0
    %139 = vmatprep.subr.mxu0 0.0
    %140 = vmatpush1.xpose.msra.mxu0 0.0
    %141 = vmatprep.subr.mxu0 0.0
    %142 = vmatpush1.xpose.msra.mxu0 0.0
    %143 = vmatprep.subr.mxu0 0.0
    %144 = vmatpush1.xpose.msra.mxu0 0.0
    %145 = vmatprep.subr.mxu0 0.0
    %146 = vmatpush1.xpose.msra.mxu0 0.0
    %147 = vmatprep.subr.mxu0 0.0
    %148 = vmatpush1.xpose.msra.mxu0 0.0
    %149 = vmatprep.subr.mxu0 0.0
    %150 = vmatpush1.xpose.msra.mxu0 0.0
    %151 = vmatprep.subr.mxu0 0.0
    %152 = vmatpush1.xpose.msra.mxu0 0.0
    %153 = vmatprep.subr.mxu0 0.0
    %154 = vmatpush1.xpose.msra.mxu0 0.0
    %155 = vmatprep.subr.mxu0 0.0
    %156 = vmatpush1.xpose.msra.mxu0 0.0
    %157 = vmatprep.subr.mxu0 0.0
    %158 = vmatpush1.xpose.msra.mxu0 0.0
    %159 = vmatprep.mubr.f32.mxu0 0.0
    %160 = vmatmul.mubr.f32.gmra.mrb[0].mxu0 %v42
    %v161 = vpop.f32.mrb[0].mxu0
    %v162 = vadd.f32 %v38, %v161
    %v163 = vpop.f32.mrb[0].mxu0
    %164 = vmatprep.mubr.f32.mxu0 0.0
    %165 = vmatmul.mubr.f32.gmra.mrb[0].mxu0 %v45
    %v166 = vpop.f32.mrb[0].mxu0
    %v167 = vadd.f32 %v38, %v166
    %v168 = vpop.f32.mrb[0].mxu0
    %169 = vdwg.mxu0
    %170 = vst [vmem:[#allocation2] sm:$0xff] %v162
    %171 = vst [vmem:[#allocation2 + $0x8] sm:$0xff] %v167
    // Predicated region
    $region14: #{tpu_custom_call.1} parent=1 // pred_check
      _
    $region15: #{tpu_custom_call.1} parent=1 // pred_check_branch
      %173 = sbr.rel (0) target = $region17
    $region16: #{tpu_custom_call.1} parent=1 // pred_region
      %s175 = ssub.s32 256, 256
      %176 = vsyncadd [#allocation3], %s175
      %s177 = sshll.u32 [#allocation2], 4
      %s178 = int_to_ptr.vmem [resolvable:$true] %s177
      %183 = dma.vmem_to_hbm [thread:$0]  %s178, 256, %s3, [#allocation3], 128, 128, 8
    $region17: #{tpu_custom_call.1} parent=1 // pred_fallthru
      _
    // Predicated region
    $region18: #{tpu_custom_call.1} parent=1 // pred_check
      _
    $region19: #{tpu_custom_call.1} parent=1 // pred_check_branch
      %185 = sbr.rel (0) target = $region21
    $region20: #{tpu_custom_call.1} parent=1 // pred_region
      %186 = dma.done [#allocation3], 256
    $region21: #{tpu_custom_call.1} parent=1 // pred_fallthru
      _
    %187 = vsyncpa [#allocation3], 1

</llo_original>
